<compile_context>
chip_gen: v5e
topology: v5e:2x2
jax: 0.10.0
libtpu: 0.0.40
codegen_flags: <defaults>
</compile_context>

<pallas_src>
import jax
import jax.numpy as jnp
from jax.experimental import pallas as pl
from jax.experimental.pallas import tpu as pltpu

# Deterministic preprocessor parameters (ImageNet defaults used by most HF
# feature extractors; the module converts every image to RGB, so C == 3).
IMAGE_MEAN = (0.485, 0.456, 0.406)
IMAGE_STD = (0.229, 0.224, 0.225)
RESCALE_FACTOR = 1.0 / 255.0


def _encode_pixel_kernel(x_ref, scale_ref, bias_ref, o_ref):
    # x_ref:    (R, tN) uint8 (or float) tile of raw pixel values
    # scale_ref/bias_ref: (R, 1) float32 per-row fused-FMA coefficients
    # o_ref:    (R, tN) float32 normalized output tile
    x = x_ref[...].astype(jnp.float32)
    o_ref[...] = x * scale_ref[...] + bias_ref[...]


def _pick_lane_tile(n, rows, bytes_budget=2 * 1024 * 1024, out_itemsize=4):
    """Largest multiple of 128 dividing `n` with rows*tile*itemsize <= budget.

    Falls back to the full dimension if n is not a multiple of 128 (legal
    because a block dim equal to the array dim is always accepted).
    """
    if n % 128 != 0:
        return n
    cap = max(128, bytes_budget // (rows * out_itemsize))
    best = 128
    t = 128
    limit = min(n, cap)
    while t <= limit:
        if n % t == 0:
            best = t
        t += 128
    return best


def vision_encode_pixel(images: jax.Array) -> jax.Array:
    """images: uint8 [B, 3, H, W] with raw pixel values in [0, 255]
    (already decoded & resized).  Returns float32 pixel_values [B, 3, H, W]
    = (images / 255 - mean) / std."""
    B, C, H, W = images.shape
    assert C == len(IMAGE_MEAN), "module converts to RGB; expected 3 channels"

    mean = jnp.asarray(IMAGE_MEAN, dtype=jnp.float32)
    std = jnp.asarray(IMAGE_STD, dtype=jnp.float32)
    # Fold rescale + normalize into one FMA per element:
    #   out = x * (rescale/std) + (-mean/std)
    scale_c = (RESCALE_FACTOR / std).astype(jnp.float32)  # (C,)
    bias_c = (-mean / std).astype(jnp.float32)            # (C,)

    R = B * C
    N = H * W
    # Per-row coefficients: row r = b*C + c  ->  channel c = r % C.
    scale_rows = jnp.tile(scale_c, B).reshape(R, 1)
    bias_rows = jnp.tile(bias_c, B).reshape(R, 1)

    # Lane-dense slab: rows = image-channel planes, lanes = flattened pixels.
    x2d = images.reshape(R, N)

    tN = _pick_lane_tile(N, R)
    grid = (N // tN,)

    out2d = pl.pallas_call(
        _encode_pixel_kernel,
        out_shape=jax.ShapeDtypeStruct((R, N), jnp.float32),
        grid=grid,
        in_specs=[
            pl.BlockSpec((R, tN), lambda j: (0, j)),   # pixel tile
            pl.BlockSpec((R, 1), lambda j: (0, 0)),    # per-row scale
            pl.BlockSpec((R, 1), lambda j: (0, 0)),    # per-row bias
        ],
        out_specs=pl.BlockSpec((R, tN), lambda j: (0, j)),
        compiler_params=pltpu.CompilerParams(
            dimension_semantics=("parallel",),
        ),
    )(x2d, scale_rows, bias_rows)

    return out2d.reshape(B, C, H, W)


if __name__ == "__main__":
    key = jax.random.PRNGKey(0)
    B, C, H, W = 2, 3, 16, 16
    # Simulate decoded RGB images with raw uint8 pixel values.
    raw = jax.random.randint(key, (B, C, H, W), 0, 256, dtype=jnp.int32)
    images = raw.astype(jnp.uint8)

    pixel_values = vision_encode_pixel(images)
    jax.block_until_ready(pixel_values)

    # Reference check (plain JAX) — same math the HF preprocessor applies.
    mean = jnp.asarray(IMAGE_MEAN, dtype=jnp.float32).reshape(1, C, 1, 1)
    std = jnp.asarray(IMAGE_STD, dtype=jnp.float32).reshape(1, C, 1, 1)
    ref = (images.astype(jnp.float32) * RESCALE_FACTOR - mean) / std
    assert pixel_values.shape == (B, C, H, W)
    assert pixel_values.dtype == jnp.float32
    assert jnp.allclose(pixel_values, ref, atol=1e-5, rtol=1e-5)

    print("KERNEL_OK")
</pallas_src>

<mosaic_0001>
module attributes {stable_mosaic.version = 11 : i64} {
  func.func @_encode_pixel_kernel(%arg0: i32, %arg1: memref<6x256xi8, #tpu.memory_space<vmem>>, %arg2: memref<6x1xf32, #tpu.memory_space<vmem>>, %arg3: memref<6x1xf32, #tpu.memory_space<vmem>>, %arg4: memref<6x256xf32, #tpu.memory_space<vmem>>) attributes {dimension_semantics = [#tpu.dimension_semantics<parallel>], iteration_bounds = array<i64: 1>, scalar_prefetch = 0 : i64, scratch_operands = 0 : i64, tpu.core_type = #tpu.core_type<tc>, window_params = [{transform_indices = @transform_0, window_bounds = array<i64: 6, 256>}, {pipeline_mode = #tpu.pipeline_mode<synchronous>, transform_indices = @transform_1, window_bounds = array<i64: 6, 1>}, {pipeline_mode = #tpu.pipeline_mode<synchronous>, transform_indices = @transform_2, window_bounds = array<i64: 6, 1>}, {transform_indices = @transform_3, window_bounds = array<i64: 6, 256>}]} {
    %c0 = arith.constant 0 : index
    %c0_0 = arith.constant 0 : index
    %0 = vector.load %arg1[%c0, %c0_0] : memref<6x256xi8, #tpu.memory_space<vmem>>, vector<6x256xi8>
    %1 = arith.uitofp %0 : vector<6x256xi8> to vector<6x256xf32>
    %c0_1 = arith.constant 0 : index
    %c0_2 = arith.constant 0 : index
    %2 = vector.load %arg2[%c0_1, %c0_2] : memref<6x1xf32, #tpu.memory_space<vmem>>, vector<6x1xf32>
    %3 = vector.broadcast %2 : vector<6x1xf32> to vector<6x256xf32>
    %4 = arith.mulf %1, %3 : vector<6x256xf32>
    %c0_3 = arith.constant 0 : index
    %c0_4 = arith.constant 0 : index
    %5 = vector.load %arg3[%c0_3, %c0_4] : memref<6x1xf32, #tpu.memory_space<vmem>>, vector<6x1xf32>
    %6 = vector.broadcast %5 : vector<6x1xf32> to vector<6x256xf32>
    %7 = arith.addf %4, %6 : vector<6x256xf32>
    %c0_5 = arith.constant 0 : index
    %c0_6 = arith.constant 0 : index
    %8 = vector.load %arg4[%c0_5, %c0_6] : memref<6x256xf32, #tpu.memory_space<vmem>>, vector<6x256xf32>
    tpu.vector_store %arg4[%c0_5, %c0_6], %7 {strides = array<i32>} : memref<6x256xf32, #tpu.memory_space<vmem>>, vector<6x256xf32>,
    return
  }
  func.func @transform_0(%arg0: i32) -> (i32, i32) {
    %c0_i32 = arith.constant 0 : i32
    %c0_i32_0 = arith.constant 0 : i32
    return %c0_i32, %arg0 : i32, i32
  }
  func.func @transform_1(%arg0: i32) -> (i32, i32) {
    %c0_i32 = arith.constant 0 : i32
    %c0_i32_0 = arith.constant 0 : i32
    %c0_i32_1 = arith.constant 0 : i32
    return %c0_i32, %c0_i32_0 : i32, i32
  }
  func.func @transform_2(%arg0: i32) -> (i32, i32) {
    %c0_i32 = arith.constant 0 : i32
    %c0_i32_0 = arith.constant 0 : i32
    %c0_i32_1 = arith.constant 0 : i32
    return %c0_i32, %c0_i32_0 : i32, i32
  }
  func.func @transform_3(%arg0: i32) -> (i32, i32) {
    %c0_i32 = arith.constant 0 : i32
    %c0_i32_0 = arith.constant 0 : i32
    return %c0_i32, %arg0 : i32, i32
  }
}

</mosaic_0001>

<llo_original>
// kernel: tpu_custom_call.1
$region0: #{tpu_custom_call.1}
  #allocation0 [shape = 'u32[]', space=smem, size = 0x4, offset = 0x4, fixed_abs, tag = 'smem constant byte address 0x4 - core index']
  #allocation1 [shape = 'u32[72,128]{1,0:T(1,128)}', space=vmem, size = 0x9000, scoped, tag = 'internal scratch']
  %s0 = inlined_call_operand.vmem [shape: u8[6,256], index: 0, kind: input, shape index: {}]
  %s1 = inlined_call_operand.vmem [shape: f32[6,1], index: 1, kind: input, shape index: {}]
  %s2 = inlined_call_operand.vmem [shape: f32[6,1], index: 2, kind: input, shape index: {}]
  %s3 = inlined_call_operand.hbm [shape: f32[6,256], index: 3, kind: output, shape index: {}]
  %s4 = sld [smem:[#allocation0]]
  $region22: #{tpu_custom_call.1} parent=0
    _
  %s6 = ssub.s32 1, %s4
  %s7 = scalar_select 0, %s6, %s4
  $region1: #{tpu_custom_call.1} parent=0
    #allocation2 [shape = 'u8[8192]{0}', space=vmem, size = 0x2000, scoped, tag = 'output window, operand 0, single buffered']
    #allocation3 [shape = 's32[1]{0}', space=sflag, size = 0x4, scoped, tag = 'scoped memory for tpu_custom_call.1']
    %8 = vsyncpa [#allocation3], 0
    // Predicated region
    $region2: #{tpu_custom_call.1} parent=1 // pred_check
      _
    $region3: #{tpu_custom_call.1} parent=1 // pred_check_branch
      %10 = sbr.rel (0) target = $region5
    $region4: #{tpu_custom_call.1} parent=1 // pred_region
      _
    $region5: #{tpu_custom_call.1} parent=1 // pred_fallthru
      _
    // Predicated region
    $region6: #{tpu_custom_call.1} parent=1 // pred_check
      _
    $region7: #{tpu_custom_call.1} parent=1 // pred_check_branch
      %12 = sbr.rel (0) target = $region9
    $region8: #{tpu_custom_call.1} parent=1 // pred_region
      _
    $region9: #{tpu_custom_call.1} parent=1 // pred_fallthru
      _
    // Predicated region
    $region10: #{tpu_custom_call.1} parent=1 // pred_check
      _
    $region11: #{tpu_custom_call.1} parent=1 // pred_check_branch
      %14 = sbr.rel (0) target = $region13
    $region12: #{tpu_custom_call.1} parent=1 // pred_region
      _
    $region13: #{tpu_custom_call.1} parent=1 // pred_fallthru
      _
    %v15 = vld [vmem:[%s0] sm:$0xf]
    %v16 = vunpack.c.0.s8 %v15
    %v17 = vunpack.c.1.s8 %v15
    %v18 = vand.u32 %v16, 255
    %v19 = vand.u32 %v17, 255
    %v20 = vcvt.s32.f32 %v18
    %v21 = vcvt.s32.f32 %v19
    %v22 = vld [vmem:[%s1] sm:$0x3f]
    %24 = vset.pattern.permute.xlu0 0
    %25 = vperm.xlu0 %24, %v22
    %v26 = vpop.permute.xlu0 %25
    %v28 = vmul.f32 %v20, %v26
    %v29 = vmul.f32 %v21, %v26
    %v30 = vld [vmem:[%s2] sm:$0x3f]
    %32 = vset.pattern.permute.xlu0 0
    %33 = vperm.xlu0 %32, %v30
    %v34 = vpop.permute.xlu0 %33
    %v36 = vadd.f32 %v28, %v34
    %v37 = vadd.f32 %v29, %v34
    %38 = vst [vmem:[#allocation2] sm:$0x3f] %v36
    %39 = vst [vmem:[#allocation2 + $0x8] sm:$0x3f] %v37
    // Predicated region
    $region14: #{tpu_custom_call.1} parent=1 // pred_check
      _
    $region15: #{tpu_custom_call.1} parent=1 // pred_check_branch
      %41 = sbr.rel (0) target = $region17
    $region16: #{tpu_custom_call.1} parent=1 // pred_region
      %43 = vsyncadd [#allocation3], 0
      %s45 = sshll.u32 [#allocation2], 4
      %s46 = int_to_ptr.vmem [resolvable:$true] %s45
      %s47 = sshll.u32 %s3, 4
      %s48 = int_to_ptr.hbm [resolvable:$true] %s47
      %50 = dma.vmem_to_hbm [thread:$0]  %s46, 256, %s48, [#allocation3]
    $region17: #{tpu_custom_call.1} parent=1 // pred_fallthru
      _
    // Predicated region
    $region18: #{tpu_custom_call.1} parent=1 // pred_check
      _
    $region19: #{tpu_custom_call.1} parent=1 // pred_check_branch
      %52 = sbr.rel (0) target = $region21
    $region20: #{tpu_custom_call.1} parent=1 // pred_region
      %54 = dma.done [#allocation3], 256
    $region21: #{tpu_custom_call.1} parent=1 // pred_fallthru
      _
    %55 = vsyncpa [#allocation3], 1

</llo_original>
